<compile_context>
chip_gen: v7x
topology: tpu7x:2x2x1
jax: 0.10.0
libtpu: 0.0.40
codegen_flags: <defaults>
</compile_context>

<pallas_src>
import numpy as np
import jax
import jax.numpy as jnp
from jax.experimental import pallas as pl
from jax.experimental.pallas import tpu as pltpu

# ----------------------------- static dimensions (from MyCNN / Linear(128, 2))
CIN1, COUT1, KS = 3, 16, 5
CIN2, COUT2 = 16, 32
H_IN = W_IN = 20            # 20 -conv5-> 16 -pool-> 8 -conv5-> 4 -pool-> 2
H1 = W1 = 8                 # conv1 pooled output spatial size
HP2 = WP2 = 2               # conv2 pooled output spatial size
FC_IN = COUT2 * HP2 * WP2   # 128
FC_OUT = 2

K1_LANES = KS * W_IN * CIN1      # 300 : conv1 contraction lanes (kh, w, cin)
BIAS_LANE = K1_LANES             # 300 : pad lane that is 1.0 (conv1 bias fold)
K1_PAD = 384                     # conv1 K padded to a multiple of 128
N1_LANES = 2 * W1 * COUT1        # 256 : conv1 output lanes (dx1, wp1, cout1)
POOL1_BLK = W1 * COUT1           # 128 : lanes per dx1 block == one (w1, c1) block
K2_LANES = KS * POOL1_BLK        # 640 : conv2 contraction lanes (kh2, w1, c1)
POOL2_HALF = WP2 * COUT2         # 64  : lanes per dx2 block (wp2, c2)
N2_LANES = 2 * POOL2_HALF        # 128 : conv2 output lanes (dx2, wp2, c2)


# ----------------------------------------------------------------- the kernel
def fused_cnn_kernel(x1_ref, w1_ref, w2_ref, s_ref, o_ref):
    rows = x1_ref.shape[0]          # 16 * B   (rows ordered (dy1, hp1, b))
    batch = rows // 16
    half = rows // 2

    # ---- conv1 (+ folded bias): one bf16 MXU matmul, f32 accumulation -------
    y = jnp.dot(x1_ref[...], w1_ref[...],
                preferred_element_type=jnp.float32)              # (16B, 256) f32
    # 2x2 max-pool: dy1 lives in the row halves, dx1 in the 128-lane halves.
    y = jnp.maximum(y[:half, :], y[half:, :])                    # (8B, 256) rows (h1, b)
    y = jnp.maximum(y[:, :POOL1_BLK], y[:, POOL1_BLK:])          # (8B, 128) lanes (w1, c1)
    a1 = jnp.maximum(y, 0.0)                                     # ReLU (bias already in)

    # ---- conv2 LHS: rows (ho2, b) = 4B, lanes (kh2, w1, c1) = 640 -----------
    # Built from register-level sublane slices of a1 (no VMEM scratch).
    lhs2 = jnp.concatenate(
        [a1[k * batch:(k + 4) * batch, :] for k in range(KS)],
        axis=1).astype(jnp.bfloat16)                             # (4B, 640) bf16

    # ---- conv2: one bf16 MXU matmul against the (640, 128) banded weight ----
    z = jnp.dot(lhs2, w2_ref[...],
                preferred_element_type=jnp.float32)              # (4B, 128) f32

    s = s_ref[...]                                               # (8, 64) f32 small params
    b2 = s[0:1, :]                                               # lanes (wp2, c2)
    # 2x2 max-pool: dy2 over row blocks, dx2 over the 64-lane halves;
    # shared bias + ReLU once after the pool (monotone => identical result).
    z0 = jnp.maximum(z[0:batch, :], z[batch:2 * batch, :])                 # hp2 = 0
    z1 = jnp.maximum(z[2 * batch:3 * batch, :], z[3 * batch:4 * batch, :]) # hp2 = 1
    a3_0 = jnp.maximum(jnp.maximum(z0[:, :POOL2_HALF], z0[:, POOL2_HALF:]) + b2, 0.0)
    a3_1 = jnp.maximum(jnp.maximum(z1[:, :POOL2_HALF], z1[:, POOL2_HALF:]) + b2, 0.0)

    # ---- fc1 on the VPU/XLU: two lane reductions per output, MXU untouched --
    y0 = (jnp.sum(a3_0 * s[1:2, :], axis=-1, keepdims=True)
          + jnp.sum(a3_1 * s[2:3, :], axis=-1, keepdims=True))   # (B, 1) logit 0
    y1 = (jnp.sum(a3_0 * s[3:4, :], axis=-1, keepdims=True)
          + jnp.sum(a3_1 * s[4:5, :], axis=-1, keepdims=True))   # (B, 1) logit 1
    o_ref[...] = jnp.concatenate([y0, y1], axis=1) + s[5:6, :FC_OUT]


# -------------------------------------------- one-time parameter layout work
def _build_conv1_banded_weight(w1, b1):
    """(COUT1,CIN1,5,5)+(COUT1,) -> (K1_PAD, 256) banded weight incl. bias row.

    Row (kh, w, cin) plus a bias row at BIAS_LANE; column (dx, wp1, cout);
    entry = w1[cout, cin, kh, kw] with kw = w - (2*wp1 + dx), zero outside."""
    w1 = np.asarray(w1, np.float32)
    band = np.zeros((K1_PAD, N1_LANES), np.float32)
    for kh in range(KS):
        for dx in range(2):
            for wp in range(W1):
                wo = 2 * wp + dx
                col = dx * POOL1_BLK + wp * COUT1
                for kw in range(KS):
                    row = kh * (W_IN * CIN1) + (wo + kw) * CIN1
                    band[row:row + CIN1, col:col + COUT1] = w1[:, :, kh, kw].T
    # bias row, multiplied by the constant 1.0 lane of x1
    band[BIAS_LANE, :] = np.tile(np.asarray(b1, np.float32), 2 * W1)
    return jnp.asarray(band, jnp.bfloat16)


def _build_conv2_banded_weight(w2):
    """(COUT2,CIN2,5,5) -> (640, 128) banded weight.

    Row (kh2, w1, c1); column (dx2, wp2, c2); entry = w2[c2, c1, kh2, kw2]
    with kw2 = w1 - (2*wp2 + dx2), zero when kw2 is outside [0, 5)."""
    w2 = np.asarray(w2, np.float32)
    band = np.zeros((K2_LANES, N2_LANES), np.float32)
    for kh in range(KS):
        for dx in range(2):
            for wp in range(WP2):
                wo = 2 * wp + dx
                col = dx * POOL2_HALF + wp * COUT2
                for kw in range(KS):
                    row = kh * POOL1_BLK + (wo + kw) * CIN2
                    band[row:row + CIN2, col:col + COUT2] = w2[:, :, kh, kw].T
    return jnp.asarray(band, jnp.bfloat16)


def _build_small_params(b2, wfc, bfc):
    """Pack b2, the lane-reordered fc1 weight and the fc1 bias into (8, 64) f32.

    Row 0: b2 per (wp2, c2) lane.  Rows 1..4: fc1 weight rows for (out, hp2)
    with lanes reordered from the NCHW flatten (c2, hp2, wp2) to (wp2, c2),
    matching the pooled conv2 lane order.  Row 5 lanes 0..1: fc1 bias."""
    wfc = np.asarray(wfc, np.float32)            # (2, 128), feat = c2*4 + hp2*2 + wp2
    small = np.zeros((8, POOL2_HALF), np.float32)
    small[0, :] = np.tile(np.asarray(b2, np.float32), WP2)
    for o in range(FC_OUT):
        for hp in range(HP2):
            for wp in range(WP2):
                for c in range(COUT2):
                    small[1 + o * HP2 + hp, wp * COUT2 + c] = \
                        wfc[o, c * HP2 * WP2 + hp * WP2 + wp]
    small[5, :FC_OUT] = np.asarray(bfc, np.float32)
    return jnp.asarray(small, jnp.float32)


def prepare_params(params):
    """One-time transforms from PyTorch layout into kernel matmul layout."""
    return {
        "w1b": _build_conv1_banded_weight(params["w1"], params["b1"]),
        "w2b": _build_conv2_banded_weight(params["w2"]),
        "small": _build_small_params(params["b2"], params["wfc"], params["bfc"]),
    }


# ------------------------------------------- per-forward glue (raw input only)
def _conv1_lhs(x_nchw):
    """NCHW input -> (16B, K1_PAD) bf16 conv1 LHS.

    Rows (dy1, hp1, b); lanes (kh, w, cin) plus a constant 1.0 lane at
    BIAS_LANE (conv1 bias fold); remaining pad lanes zero."""
    batch = x_nchw.shape[0]
    x = jnp.transpose(x_nchw, (0, 2, 3, 1)).astype(jnp.float32)     # (B, 20, 20, 3)
    dy_blocks = []
    for dy in range(2):
        kh_lanes = []
        for kh in range(KS):
            s = dy + kh                                             # h = 2*hp1 + s
            slab = x[:, s:s + 2 * H1 - 1:2, :, :]                   # (B, 8, 20, 3)
            slab = jnp.transpose(slab, (1, 0, 2, 3)).reshape(H1 * batch, W_IN * CIN1)
            kh_lanes.append(slab)
        dy_blocks.append(jnp.concatenate(kh_lanes, axis=1))         # (8B, 300)
    lhs = jnp.concatenate(dy_blocks, axis=0)                        # (16B, 300)
    rows = lhs.shape[0]
    lhs = jnp.concatenate(
        [lhs,
         jnp.ones((rows, 1), jnp.float32),                          # bias lane (= 1.0)
         jnp.zeros((rows, K1_PAD - K1_LANES - 1), jnp.float32)], axis=1)
    return lhs.astype(jnp.bfloat16)


def _vmem():
    return pl.BlockSpec(memory_space=pltpu.MemorySpace.VMEM)


@jax.jit
def my_cnn_forward(prepared, x_nchw):
    batch = x_nchw.shape[0]
    x1 = _conv1_lhs(x_nchw)
    return pl.pallas_call(
        fused_cnn_kernel,
        out_shape=jax.ShapeDtypeStruct((batch, FC_OUT), jnp.float32),
        in_specs=[_vmem()] * 4,
        out_specs=_vmem(),
    )(x1, prepared["w1b"], prepared["w2b"], prepared["small"])


# ---------------------------------------------------------- reference & init
def reference_forward(params, x_nchw):
    """Pure-JAX/XLA reference identical to the PyTorch module (f32)."""
    def conv(x, w, b):
        y = jax.lax.conv_general_dilated(
            x, w, window_strides=(1, 1), padding="VALID",
            dimension_numbers=("NCHW", "OIHW", "NCHW"))
        return y + b[None, :, None, None]

    def pool2x2(x):
        b, c, h, w = x.shape
        return x.reshape(b, c, h // 2, 2, w // 2, 2).max(axis=(3, 5))

    x = x_nchw.astype(jnp.float32)
    x = pool2x2(jax.nn.relu(conv(x, params["w1"], params["b1"])))
    x = pool2x2(jax.nn.relu(conv(x, params["w2"], params["b2"])))
    x = x.reshape(x.shape[0], -1)
    return x @ params["wfc"].T + params["bfc"]


def init_params(key):
    """Deterministic synthetic parameters (PyTorch-style uniform fan-in init)."""
    ks = jax.random.split(key, 6)

    def u(k, shape, fan_in):
        bound = 1.0 / (fan_in ** 0.5)
        return jax.random.uniform(k, shape, jnp.float32, -bound, bound)

    return {
        "w1": u(ks[0], (COUT1, CIN1, KS, KS), CIN1 * KS * KS),
        "b1": u(ks[1], (COUT1,), CIN1 * KS * KS),
        "w2": u(ks[2], (COUT2, CIN2, KS, KS), CIN2 * KS * KS),
        "b2": u(ks[3], (COUT2,), CIN2 * KS * KS),
        "wfc": u(ks[4], (FC_OUT, FC_IN), FC_IN),
        "bfc": u(ks[5], (FC_OUT,), FC_IN),
    }


if __name__ == "__main__":
    key = jax.random.PRNGKey(0)
    pkey, xkey = jax.random.split(key)
    params = init_params(pkey)
    prepared = prepare_params(params)          # layout transforms done once
    # Spatial size 20: conv5 -> 16 -> pool -> 8 -> conv5 -> 4 -> pool -> 2,
    # so flattened features = 32 * 2 * 2 = 128, matching fc1 = Linear(128, 2).
    x = jax.random.normal(xkey, (2, CIN1, H_IN, W_IN), jnp.float32)

    out = jax.block_until_ready(my_cnn_forward(prepared, x))
    assert out.shape == (2, FC_OUT) and out.dtype == jnp.float32

    ref = reference_forward(params, x)
    np.testing.assert_allclose(np.asarray(out), np.asarray(ref),
                               rtol=5e-2, atol=5e-2)
    print("KERNEL_OK")
</pallas_src>

<mosaic_0001>
module attributes {stable_mosaic.version = 11 : i64} {
  func.func @fused_cnn_kernel(%arg0: memref<32x384xbf16, #tpu.memory_space<vmem>>, %arg1: memref<384x256xbf16, #tpu.memory_space<vmem>>, %arg2: memref<640x128xbf16, #tpu.memory_space<vmem>>, %arg3: memref<8x64xf32, #tpu.memory_space<vmem>>, %arg4: memref<2x2xf32, #tpu.memory_space<vmem>>) attributes {dimension_semantics = [], scalar_prefetch = 0 : i64, scratch_operands = 0 : i64, tpu.core_type = #tpu.core_type<tc>} {
    %c0 = arith.constant 0 : index
    %c0_0 = arith.constant 0 : index
    %0 = vector.load %arg0[%c0, %c0_0] : memref<32x384xbf16, #tpu.memory_space<vmem>>, vector<32x384xbf16>
    %c0_1 = arith.constant 0 : index
    %c0_2 = arith.constant 0 : index
    %1 = vector.load %arg1[%c0_1, %c0_2] : memref<384x256xbf16, #tpu.memory_space<vmem>>, vector<384x256xbf16>
    %cst = arith.constant dense<0.000000e+00> : vector<32x256xf32>
    %2 = tpu.matmul %0, %1, %cst {dimension_numbers = #tpu.dot_dimension_numbers<[1], [0], [0], [1], [0, 0, 1, 1], [], []>} : vector<32x384xbf16>, vector<384x256xbf16>, vector<32x256xf32> -> vector<32x256xf32>
    %3 = vector.extract_strided_slice %2 {offsets = [0, 0], sizes = [16, 256], strides = [1, 1]} : vector<32x256xf32> to vector<16x256xf32>
    %4 = vector.extract_strided_slice %2 {offsets = [16, 0], sizes = [16, 256], strides = [1, 1]} : vector<32x256xf32> to vector<16x256xf32>
    %5 = arith.maximumf %3, %4 : vector<16x256xf32>
    %6 = vector.extract_strided_slice %5 {offsets = [0, 0], sizes = [16, 128], strides = [1, 1]} : vector<16x256xf32> to vector<16x128xf32>
    %7 = vector.extract_strided_slice %5 {offsets = [0, 128], sizes = [16, 128], strides = [1, 1]} : vector<16x256xf32> to vector<16x128xf32>
    %8 = arith.maximumf %6, %7 : vector<16x128xf32>
    %cst_3 = arith.constant 0.000000e+00 : f32
    %9 = vector.broadcast %cst_3 : f32 to vector<16x128xf32>
    %10 = arith.maximumf %8, %9 : vector<16x128xf32>
    %11 = vector.extract_strided_slice %10 {offsets = [0, 0], sizes = [8, 128], strides = [1, 1]} : vector<16x128xf32> to vector<8x128xf32>
    %12 = vector.extract_strided_slice %10 {offsets = [2, 0], sizes = [8, 128], strides = [1, 1]} : vector<16x128xf32> to vector<8x128xf32>
    %13 = vector.extract_strided_slice %10 {offsets = [4, 0], sizes = [8, 128], strides = [1, 1]} : vector<16x128xf32> to vector<8x128xf32>
    %14 = vector.extract_strided_slice %10 {offsets = [6, 0], sizes = [8, 128], strides = [1, 1]} : vector<16x128xf32> to vector<8x128xf32>
    %15 = vector.extract_strided_slice %10 {offsets = [8, 0], sizes = [8, 128], strides = [1, 1]} : vector<16x128xf32> to vector<8x128xf32>
    %16 = tpu.concatenate %11, %12, %13, %14, %15 in 1 : vector<8x128xf32>, vector<8x128xf32>, vector<8x128xf32>, vector<8x128xf32>, vector<8x128xf32> -> vector<8x640xf32>
    %17 = arith.truncf %16 : vector<8x640xf32> to vector<8x640xbf16>
    %c0_4 = arith.constant 0 : index
    %c0_5 = arith.constant 0 : index
    %18 = vector.load %arg2[%c0_4, %c0_5] : memref<640x128xbf16, #tpu.memory_space<vmem>>, vector<640x128xbf16>
    %cst_6 = arith.constant dense<0.000000e+00> : vector<8x128xf32>
    %19 = tpu.matmul %17, %18, %cst_6 {dimension_numbers = #tpu.dot_dimension_numbers<[1], [0], [0], [1], [0, 0, 1, 1], [], []>} : vector<8x640xbf16>, vector<640x128xbf16>, vector<8x128xf32> -> vector<8x128xf32>
    %c0_7 = arith.constant 0 : index
    %c0_8 = arith.constant 0 : index
    %20 = vector.load %arg3[%c0_7, %c0_8] : memref<8x64xf32, #tpu.memory_space<vmem>>, vector<8x64xf32>
    %21 = vector.extract_strided_slice %20 {offsets = [0, 0], sizes = [1, 64], strides = [1, 1]} : vector<8x64xf32> to vector<1x64xf32>
    %22 = vector.extract_strided_slice %19 {offsets = [0, 0], sizes = [2, 128], strides = [1, 1]} : vector<8x128xf32> to vector<2x128xf32>
    %23 = vector.extract_strided_slice %19 {offsets = [2, 0], sizes = [2, 128], strides = [1, 1]} : vector<8x128xf32> to vector<2x128xf32>
    %24 = arith.maximumf %22, %23 : vector<2x128xf32>
    %25 = vector.extract_strided_slice %19 {offsets = [4, 0], sizes = [2, 128], strides = [1, 1]} : vector<8x128xf32> to vector<2x128xf32>
    %26 = vector.extract_strided_slice %19 {offsets = [6, 0], sizes = [2, 128], strides = [1, 1]} : vector<8x128xf32> to vector<2x128xf32>
    %27 = arith.maximumf %25, %26 : vector<2x128xf32>
    %28 = vector.extract_strided_slice %24 {offsets = [0, 0], sizes = [2, 64], strides = [1, 1]} : vector<2x128xf32> to vector<2x64xf32>
    %29 = vector.extract_strided_slice %24 {offsets = [0, 64], sizes = [2, 64], strides = [1, 1]} : vector<2x128xf32> to vector<2x64xf32>
    %30 = arith.maximumf %28, %29 : vector<2x64xf32>
    %31 = vector.broadcast %21 : vector<1x64xf32> to vector<2x64xf32>
    %32 = arith.addf %30, %31 : vector<2x64xf32>
    %cst_9 = arith.constant 0.000000e+00 : f32
    %33 = vector.broadcast %cst_9 : f32 to vector<2x64xf32>
    %34 = arith.maximumf %32, %33 : vector<2x64xf32>
    %35 = vector.extract_strided_slice %27 {offsets = [0, 0], sizes = [2, 64], strides = [1, 1]} : vector<2x128xf32> to vector<2x64xf32>
    %36 = vector.extract_strided_slice %27 {offsets = [0, 64], sizes = [2, 64], strides = [1, 1]} : vector<2x128xf32> to vector<2x64xf32>
    %37 = arith.maximumf %35, %36 : vector<2x64xf32>
    %38 = vector.broadcast %21 : vector<1x64xf32> to vector<2x64xf32>
    %39 = arith.addf %37, %38 : vector<2x64xf32>
    %cst_10 = arith.constant 0.000000e+00 : f32
    %40 = vector.broadcast %cst_10 : f32 to vector<2x64xf32>
    %41 = arith.maximumf %39, %40 : vector<2x64xf32>
    %42 = vector.extract_strided_slice %20 {offsets = [1, 0], sizes = [1, 64], strides = [1, 1]} : vector<8x64xf32> to vector<1x64xf32>
    %43 = vector.broadcast %42 : vector<1x64xf32> to vector<2x64xf32>
    %44 = arith.mulf %34, %43 : vector<2x64xf32>
    %cst_11 = arith.constant dense<0.000000e+00> : vector<2xf32>
    %45 = vector.multi_reduction <add>, %44, %cst_11 [1] : vector<2x64xf32> to vector<2xf32>
    %46 = vector.shape_cast %45 : vector<2xf32> to vector<2x1xf32>
    %47 = vector.extract_strided_slice %20 {offsets = [2, 0], sizes = [1, 64], strides = [1, 1]} : vector<8x64xf32> to vector<1x64xf32>
    %48 = vector.broadcast %47 : vector<1x64xf32> to vector<2x64xf32>
    %49 = arith.mulf %41, %48 : vector<2x64xf32>
    %cst_12 = arith.constant dense<0.000000e+00> : vector<2xf32>
    %50 = vector.multi_reduction <add>, %49, %cst_12 [1] : vector<2x64xf32> to vector<2xf32>
    %51 = vector.shape_cast %50 : vector<2xf32> to vector<2x1xf32>
    %52 = arith.addf %46, %51 : vector<2x1xf32>
    %53 = vector.extract_strided_slice %20 {offsets = [3, 0], sizes = [1, 64], strides = [1, 1]} : vector<8x64xf32> to vector<1x64xf32>
    %54 = vector.broadcast %53 : vector<1x64xf32> to vector<2x64xf32>
    %55 = arith.mulf %34, %54 : vector<2x64xf32>
    %cst_13 = arith.constant dense<0.000000e+00> : vector<2xf32>
    %56 = vector.multi_reduction <add>, %55, %cst_13 [1] : vector<2x64xf32> to vector<2xf32>
    %57 = vector.shape_cast %56 : vector<2xf32> to vector<2x1xf32>
    %58 = vector.extract_strided_slice %20 {offsets = [4, 0], sizes = [1, 64], strides = [1, 1]} : vector<8x64xf32> to vector<1x64xf32>
    %59 = vector.broadcast %58 : vector<1x64xf32> to vector<2x64xf32>
    %60 = arith.mulf %41, %59 : vector<2x64xf32>
    %cst_14 = arith.constant dense<0.000000e+00> : vector<2xf32>
    %61 = vector.multi_reduction <add>, %60, %cst_14 [1] : vector<2x64xf32> to vector<2xf32>
    %62 = vector.shape_cast %61 : vector<2xf32> to vector<2x1xf32>
    %63 = arith.addf %57, %62 : vector<2x1xf32>
    %64 = tpu.concatenate %52, %63 in 1 : vector<2x1xf32>, vector<2x1xf32> -> vector<2x2xf32>
    %65 = vector.extract_strided_slice %20 {offsets = [5, 0], sizes = [1, 2], strides = [1, 1]} : vector<8x64xf32> to vector<1x2xf32>
    %66 = vector.broadcast %65 : vector<1x2xf32> to vector<2x2xf32>
    %67 = arith.addf %64, %66 : vector<2x2xf32>
    %c0_15 = arith.constant 0 : index
    %c0_16 = arith.constant 0 : index
    %68 = vector.load %arg4[%c0_15, %c0_16] : memref<2x2xf32, #tpu.memory_space<vmem>>, vector<2x2xf32>
    tpu.vector_store %arg4[%c0_15, %c0_16], %67 {strides = array<i32>} : memref<2x2xf32, #tpu.memory_space<vmem>>, vector<2x2xf32>,
    return
  }
}

</mosaic_0001>

<llo_original>
// kernel: my_cnn_forward.1
$region0: #{my_cnn_forward.1}
  #allocation0 [shape = 'u32[]', space=smem, size = 0x4, offset = 0x4, fixed_abs, tag = 'smem constant byte address 0x4 - core index']
  #allocation1 [shape = 'u32[144,128]{1,0:T(1,128)}', space=vmem, size = 0x12000, scoped, tag = 'internal scratch']
  %s0 = inlined_call_operand.vmem [shape: bf16[32,384], index: 0, kind: input, shape index: {}]
  %s1 = inlined_call_operand.vmem [shape: bf16[384,256], index: 1, kind: input, shape index: {}]
  %s2 = inlined_call_operand.vmem [shape: bf16[640,128], index: 2, kind: input, shape index: {}]
  %s3 = inlined_call_operand.vmem [shape: f32[8,64], index: 3, kind: input, shape index: {}]
  %s4 = inlined_call_operand.hbm [shape: f32[2,2], index: 4, kind: output, shape index: {}]
  %s5 = sld [smem:[#allocation0]]
  $region26: #{my_cnn_forward.1} parent=0
    _
  %s7 = ssub.s32 1, %s5
  %s8 = scalar_select 0, %s7, %s5
  $region1: #{my_cnn_forward.1} parent=0
    #allocation2 [shape = 'u8[1024]{0}', space=vmem, size = 0x400, scoped, tag = 'output window, operand 0, single buffered']
    #allocation3 [shape = 's32[1]{0}', space=sflag, size = 0x4, scoped, tag = 'scoped memory for my_cnn_forward.1']
    %9 = vsyncpa [#allocation3], 0
    // Predicated region
    $region2: #{my_cnn_forward.1} parent=1 // pred_check
      _
    $region3: #{my_cnn_forward.1} parent=1 // pred_check_branch
      %11 = sbr.rel (0) target = $region5
    $region4: #{my_cnn_forward.1} parent=1 // pred_region
      _
    $region5: #{my_cnn_forward.1} parent=1 // pred_fallthru
      _
    // Predicated region
    $region6: #{my_cnn_forward.1} parent=1 // pred_check
      _
    $region7: #{my_cnn_forward.1} parent=1 // pred_check_branch
      %13 = sbr.rel (0) target = $region9
    $region8: #{my_cnn_forward.1} parent=1 // pred_region
      _
    $region9: #{my_cnn_forward.1} parent=1 // pred_fallthru
      _
    // Predicated region
    $region10: #{my_cnn_forward.1} parent=1 // pred_check
      _
    $region11: #{my_cnn_forward.1} parent=1 // pred_check_branch
      %15 = sbr.rel (0) target = $region13
    $region12: #{my_cnn_forward.1} parent=1 // pred_region
      _
    $region13: #{my_cnn_forward.1} parent=1 // pred_fallthru
      _
    // Predicated region
    $region14: #{my_cnn_forward.1} parent=1 // pred_check
      _
    $region15: #{my_cnn_forward.1} parent=1 // pred_check_branch
      %17 = sbr.rel (0) target = $region17
    $region16: #{my_cnn_forward.1} parent=1 // pred_region
      _
    $region17: #{my_cnn_forward.1} parent=1 // pred_fallthru
      _
    %v19 = vld [vmem:[%s0] sm:$0xff]
    %v20 = vld [vmem:[%s0 + $0x8] sm:$0xf]
    %v21 = vld [vmem:[%s0 + $0xc] sm:$0xff]
    %v22 = vld [vmem:[%s0 + $0x14] sm:$0xf]
    %v23 = vld [vmem:[%s0 + $0x18] sm:$0xff]
    %v24 = vld [vmem:[%s0 + $0x20] sm:$0xf]
    %v25 = vld [vmem:[%s0 + $0x24] sm:$0xff]
    %v26 = vld [vmem:[%s0 + $0x2c] sm:$0xf]
    %v27 = vld [vmem:[%s1] sm:$0xff]
    %v28 = vld [vmem:[%s1 + $0x8] sm:$0xff]
    %v29 = vld [vmem:[%s1 + $0x10] sm:$0xff]
    %v30 = vld [vmem:[%s1 + $0x18] sm:$0xff]
    %v31 = vld [vmem:[%s1 + $0x20] sm:$0xff]
    %v32 = vld [vmem:[%s1 + $0x28] sm:$0xff]
    %v33 = vld [vmem:[%s1 + $0x30] sm:$0xff]
    %v34 = vld [vmem:[%s1 + $0x38] sm:$0xff]
    %v35 = vld [vmem:[%s1 + $0x40] sm:$0xff]
    %v36 = vld [vmem:[%s1 + $0x48] sm:$0xff]
    %v37 = vld [vmem:[%s1 + $0x50] sm:$0xff]
    %v38 = vld [vmem:[%s1 + $0x58] sm:$0xff]
    %v39 = vld [vmem:[%s1 + $0x60] sm:$0xff]
    %v40 = vld [vmem:[%s1 + $0x68] sm:$0xff]
    %v41 = vld [vmem:[%s1 + $0x70] sm:$0xff]
    %v42 = vld [vmem:[%s1 + $0x78] sm:$0xff]
    %v43 = vld [vmem:[%s1 + $0x80] sm:$0xff]
    %v44 = vld [vmem:[%s1 + $0x88] sm:$0xff]
    %v45 = vld [vmem:[%s1 + $0x90] sm:$0xff]
    %v46 = vld [vmem:[%s1 + $0x98] sm:$0xff]
    %v47 = vld [vmem:[%s1 + $0xa0] sm:$0xff]
    %v48 = vld [vmem:[%s1 + $0xa8] sm:$0xff]
    %v49 = vld [vmem:[%s1 + $0xb0] sm:$0xff]
    %v50 = vld [vmem:[%s1 + $0xb8] sm:$0xff]
    %v51 = vld [vmem:[%s1 + $0xc0] sm:$0xff]
    %v52 = vld [vmem:[%s1 + $0xc8] sm:$0xff]
    %v53 = vld [vmem:[%s1 + $0xd0] sm:$0xff]
    %v54 = vld [vmem:[%s1 + $0xd8] sm:$0xff]
    %v55 = vld [vmem:[%s1 + $0xe0] sm:$0xff]
    %v56 = vld [vmem:[%s1 + $0xe8] sm:$0xff]
    %v57 = vld [vmem:[%s1 + $0xf0] sm:$0xff]
    %v58 = vld [vmem:[%s1 + $0xf8] sm:$0xff]
    %v59 = vld [vmem:[%s1 + $0x100] sm:$0xff]
    %v60 = vld [vmem:[%s1 + $0x108] sm:$0xff]
    %v61 = vld [vmem:[%s1 + $0x110] sm:$0xff]
    %v62 = vld [vmem:[%s1 + $0x118] sm:$0xff]
    %v63 = vld [vmem:[%s1 + $0x120] sm:$0xff]
    %v64 = vld [vmem:[%s1 + $0x128] sm:$0xff]
    %v65 = vld [vmem:[%s1 + $0x130] sm:$0xff]
    %v66 = vld [vmem:[%s1 + $0x138] sm:$0xff]
    %v67 = vld [vmem:[%s1 + $0x140] sm:$0xff]
    %v68 = vld [vmem:[%s1 + $0x148] sm:$0xff]
    %v69 = vld [vmem:[%s1 + $0x150] sm:$0xff]
    %v70 = vld [vmem:[%s1 + $0x158] sm:$0xff]
    %v71 = vld [vmem:[%s1 + $0x160] sm:$0xff]
    %v72 = vld [vmem:[%s1 + $0x168] sm:$0xff]
    %v73 = vld [vmem:[%s1 + $0x170] sm:$0xff]
    %v74 = vld [vmem:[%s1 + $0x178] sm:$0xff]
    %v83 = vunpack.c.l.b16 %v19
    %v84 = vunpack.c.h.b16 %v19
    %v85 = vunpack.c.l.b16 %v20
    %v86 = vunpack.c.l.b16 %v21
    %v87 = vunpack.c.h.b16 %v21
    %v88 = vunpack.c.l.b16 %v22
    %v89 = vunpack.c.l.b16 %v23
    %v90 = vunpack.c.h.b16 %v23
    %v91 = vunpack.c.l.b16 %v24
    %v92 = vunpack.c.l.b16 %v25
    %v93 = vunpack.c.h.b16 %v25
    %v94 = vunpack.c.l.b16 %v26
    %v95 = vpack.c.b16 %v86, %v83
    %v96 = vpack.c.b16 %v87, %v84
    %v97 = vpack.c.b16 %v88, %v85
    %v98 = vpack.c.b16 %v92, %v89
    %v99 = vpack.c.b16 %v93, %v90
    %v100 = vpack.c.b16 %v94, %v91
    %v155 = vunpack.c.l.b16 %v27
    %v156 = vunpack.c.h.b16 %v27
    %v157 = vunpack.c.l.b16 %v28
    %v158 = vunpack.c.h.b16 %v28
    %v159 = vunpack.c.l.b16 %v29
    %v160 = vunpack.c.h.b16 %v29
    %v161 = vunpack.c.l.b16 %v30
    %v162 = vunpack.c.h.b16 %v30
    %v163 = vunpack.c.l.b16 %v31
    %v164 = vunpack.c.h.b16 %v31
    %v165 = vunpack.c.l.b16 %v32
    %v166 = vunpack.c.h.b16 %v32
    %v167 = vunpack.c.l.b16 %v33
    %v168 = vunpack.c.h.b16 %v33
    %v169 = vunpack.c.l.b16 %v34
    %v170 = vunpack.c.h.b16 %v34
    %v171 = vunpack.c.l.b16 %v35
    %v172 = vunpack.c.h.b16 %v35
    %v173 = vunpack.c.l.b16 %v36
    %v174 = vunpack.c.h.b16 %v36
    %v175 = vunpack.c.l.b16 %v37
    %v176 = vunpack.c.h.b16 %v37
    %v177 = vunpack.c.l.b16 %v38
    %v178 = vunpack.c.h.b16 %v38
    %v179 = vunpack.c.l.b16 %v39
    %v180 = vunpack.c.h.b16 %v39
    %v181 = vunpack.c.l.b16 %v40
    %v182 = vunpack.c.h.b16 %v40
    %v183 = vunpack.c.l.b16 %v41
    %v184 = vunpack.c.h.b16 %v41
    %v185 = vunpack.c.l.b16 %v42
    %v186 = vunpack.c.h.b16 %v42
    %v187 = vunpack.c.l.b16 %v43
    %v188 = vunpack.c.h.b16 %v43
    %v189 = vunpack.c.l.b16 %v44
    %v190 = vunpack.c.h.b16 %v44
    %v191 = vunpack.c.l.b16 %v45
    %v192 = vunpack.c.h.b16 %v45
    %v193 = vunpack.c.l.b16 %v46
    %v194 = vunpack.c.h.b16 %v46
    %v195 = vunpack.c.l.b16 %v47
    %v196 = vunpack.c.h.b16 %v47
    %v197 = vunpack.c.l.b16 %v48
    %v198 = vunpack.c.h.b16 %v48
    %v199 = vunpack.c.l.b16 %v49
    %v200 = vunpack.c.h.b16 %v49
    %v201 = vunpack.c.l.b16 %v50
    %v202 = vunpack.c.h.b16 %v50
    %v203 = vunpack.c.l.b16 %v51
    %v204 = vunpack.c.h.b16 %v51
    %v205 = vunpack.c.l.b16 %v52
    %v206 = vunpack.c.h.b16 %v52
    %v207 = vunpack.c.l.b16 %v53
    %v208 = vunpack.c.h.b16 %v53
    %v209 = vunpack.c.l.b16 %v54
    %v210 = vunpack.c.h.b16 %v54
    %v211 = vunpack.c.l.b16 %v55
    %v212 = vunpack.c.h.b16 %v55
    %v213 = vunpack.c.l.b16 %v56
    %v214 = vunpack.c.h.b16 %v56
    %v215 = vunpack.c.l.b16 %v57
    %v216 = vunpack.c.h.b16 %v57
    %v217 = vunpack.c.l.b16 %v58
    %v218 = vunpack.c.h.b16 %v58
    %v219 = vunpack.c.l.b16 %v59
    %v220 = vunpack.c.h.b16 %v59
    %v221 = vunpack.c.l.b16 %v60
    %v222 = vunpack.c.h.b16 %v60
    %v223 = vunpack.c.l.b16 %v61
    %v224 = vunpack.c.h.b16 %v61
    %v225 = vunpack.c.l.b16 %v62
    %v226 = vunpack.c.h.b16 %v62
    %v227 = vunpack.c.l.b16 %v63
    %v228 = vunpack.c.h.b16 %v63
    %v229 = vunpack.c.l.b16 %v64
    %v230 = vunpack.c.h.b16 %v64
    %v231 = vunpack.c.l.b16 %v65
    %v232 = vunpack.c.h.b16 %v65
    %v233 = vunpack.c.l.b16 %v66
    %v234 = vunpack.c.h.b16 %v66
    %v235 = vunpack.c.l.b16 %v67
    %v236 = vunpack.c.h.b16 %v67
    %v237 = vunpack.c.l.b16 %v68
    %v238 = vunpack.c.h.b16 %v68
    %v239 = vunpack.c.l.b16 %v69
    %v240 = vunpack.c.h.b16 %v69
    %v241 = vunpack.c.l.b16 %v70
    %v242 = vunpack.c.h.b16 %v70
    %v243 = vunpack.c.l.b16 %v71
    %v244 = vunpack.c.h.b16 %v71
    %v245 = vunpack.c.l.b16 %v72
    %v246 = vunpack.c.h.b16 %v72
    %v247 = vunpack.c.l.b16 %v73
    %v248 = vunpack.c.h.b16 %v73
    %v249 = vunpack.c.l.b16 %v74
    %v250 = vunpack.c.h.b16 %v74
    %v251 = vpack.c.b16 %v157, %v155
    %v252 = vpack.c.b16 %v158, %v156
    %v253 = vpack.c.b16 %v161, %v159
    %v254 = vpack.c.b16 %v162, %v160
    %v255 = vpack.c.b16 %v165, %v163
    %v256 = vpack.c.b16 %v166, %v164
    %v257 = vpack.c.b16 %v169, %v167
    %v258 = vpack.c.b16 %v170, %v168
    %v259 = vpack.c.b16 %v173, %v171
    %v260 = vpack.c.b16 %v174, %v172
    %v261 = vpack.c.b16 %v177, %v175
    %v262 = vpack.c.b16 %v178, %v176
    %v263 = vpack.c.b16 %v181, %v179
    %v264 = vpack.c.b16 %v182, %v180
    %v265 = vpack.c.b16 %v185, %v183
    %v266 = vpack.c.b16 %v186, %v184
    %v267 = vpack.c.b16 %v189, %v187
    %v268 = vpack.c.b16 %v190, %v188
    %v269 = vpack.c.b16 %v193, %v191
    %v270 = vpack.c.b16 %v194, %v192
    %v271 = vpack.c.b16 %v197, %v195
    %v272 = vpack.c.b16 %v198, %v196
    %v273 = vpack.c.b16 %v201, %v199
    %v274 = vpack.c.b16 %v202, %v200
    %v275 = vpack.c.b16 %v205, %v203
    %v276 = vpack.c.b16 %v206, %v204
    %v277 = vpack.c.b16 %v209, %v207
    %v278 = vpack.c.b16 %v210, %v208
    %v279 = vpack.c.b16 %v213, %v211
    %v280 = vpack.c.b16 %v214, %v212
    %v281 = vpack.c.b16 %v217, %v215
    %v282 = vpack.c.b16 %v218, %v216
    %v283 = vpack.c.b16 %v221, %v219
    %v284 = vpack.c.b16 %v222, %v220
    %v285 = vpack.c.b16 %v225, %v223
    %v286 = vpack.c.b16 %v226, %v224
    %v287 = vpack.c.b16 %v229, %v227
    %v288 = vpack.c.b16 %v230, %v228
    %v289 = vpack.c.b16 %v233, %v231
    %v290 = vpack.c.b16 %v234, %v232
    %v291 = vpack.c.b16 %v237, %v235
    %v292 = vpack.c.b16 %v238, %v236
    %v293 = vpack.c.b16 %v241, %v239
    %v294 = vpack.c.b16 %v242, %v240
    %v295 = vpack.c.b16 %v245, %v243
    %v296 = vpack.c.b16 %v246, %v244
    %v297 = vpack.c.b16 %v249, %v247
    %v298 = vpack.c.b16 %v250, %v248
    %347 = vmatprep.subr.bf16.mxu0 %v252
    %348 = vmatpush1.bf16.msra.mxu0 %v251
    %349 = vmatprep.subr.bf16.mxu0 %v254
    %350 = vmatpush1.bf16.msra.mxu0 %v253
    %351 = vmatprep.subr.bf16.mxu0 %v256
    %352 = vmatpush1.bf16.msra.mxu0 %v255
    %353 = vmatprep.subr.bf16.mxu0 %v258
    %354 = vmatpush1.bf16.msra.mxu0 %v257
    %355 = vmatprep.subr.bf16.mxu0 %v260
    %356 = vmatpush1.bf16.msra.mxu0 %v259
    %357 = vmatprep.subr.bf16.mxu0 %v262
    %358 = vmatpush1.bf16.msra.mxu0 %v261
    %359 = vmatprep.subr.bf16.mxu0 %v264
    %360 = vmatpush1.bf16.msra.mxu0 %v263
    %361 = vmatprep.subr.bf16.mxu0 %v266
    %362 = vmatpush1.bf16.msra.mxu0 %v265
    %363 = vmatprep.subr.bf16.mxu0 %v268
    %364 = vmatpush1.bf16.msra.mxu0 %v267
    %365 = vmatprep.subr.bf16.mxu0 %v270
    %366 = vmatpush1.bf16.msra.mxu0 %v269
    %367 = vmatprep.subr.bf16.mxu0 %v272
    %368 = vmatpush1.bf16.msra.mxu0 %v271
    %369 = vmatprep.subr.bf16.mxu0 %v274
    %370 = vmatpush1.bf16.msra.mxu0 %v273
    %371 = vmatprep.subr.bf16.mxu0 %v276
    %372 = vmatpush1.bf16.msra.mxu0 %v275
    %373 = vmatprep.subr.bf16.mxu0 %v278
    %374 = vmatpush1.bf16.msra.mxu0 %v277
    %375 = vmatprep.subr.bf16.mxu0 %v280
    %376 = vmatpush1.bf16.msra.mxu0 %v279
    %377 = vmatprep.subr.bf16.mxu0 %v282
    %378 = vmatpush1.bf16.msra.mxu0 %v281
    %379 = vmatprep.mubr.bf16.mxu0 %v96
    %380 = vmatmul.mubr.bf16.gmra.mrb[0].mxu0 %v95
    %v381 = vpop.f32.mrb[0].mxu0
    %v382 = vadd.f32 0.0, %v381
    %v383 = vpop.f32.mrb[0].mxu0
    %v384 = vadd.f32 0.0, %v383
    %v385 = vpop.f32.mrb[0].mxu0
    %v386 = vadd.f32 0.0, %v385
    %v387 = vpop.f32.mrb[0].mxu0
    %v388 = vadd.f32 0.0, %v387
    %389 = vmatprep.mubr.bf16.mxu0 %v99
    %390 = vmatmul.mubr.bf16.gmra.mrb[0].mxu0 %v98
    %v391 = vpop.f32.mrb[0].mxu0
    %v392 = vadd.f32 0.0, %v391
    %v393 = vpop.f32.mrb[0].mxu0
    %v394 = vadd.f32 0.0, %v393
    %v395 = vpop.f32.mrb[0].mxu0
    %v396 = vadd.f32 0.0, %v395
    %v397 = vpop.f32.mrb[0].mxu0
    %v398 = vadd.f32 0.0, %v397
    %399 = vdwg.mxu0
    %400 = vmatprep.subr.bf16.mxu0 %v284
    %401 = vmatpush1.bf16.msra.mxu0 %v283
    %402 = vmatprep.subr.bf16.mxu0 %v286
    %403 = vmatpush1.bf16.msra.mxu0 %v285
    %404 = vmatprep.subr.bf16.mxu0 %v288
    %405 = vmatpush1.bf16.msra.mxu0 %v287
    %406 = vmatprep.subr.bf16.mxu0 %v290
    %407 = vmatpush1.bf16.msra.mxu0 %v289
    %408 = vmatprep.subr.bf16.mxu0 %v292
    %409 = vmatpush1.bf16.msra.mxu0 %v291
    %410 = vmatprep.subr.bf16.mxu0 %v294
    %411 = vmatpush1.bf16.msra.mxu0 %v293
    %412 = vmatprep.subr.bf16.mxu0 %v296
    %413 = vmatpush1.bf16.msra.mxu0 %v295
    %414 = vmatprep.subr.bf16.mxu0 %v298
    %415 = vmatpush1.bf16.msra.mxu0 %v297
    %416 = vmatprep.subr.bf16.mxu0 0
    %417 = vmatpush1.bf16.msra.mxu0 0
    %418 = vmatprep.subr.bf16.mxu0 0
    %419 = vmatpush1.bf16.msra.mxu0 0
    %420 = vmatprep.subr.bf16.mxu0 0
    %421 = vmatpush1.bf16.msra.mxu0 0
    %422 = vmatprep.subr.bf16.mxu0 0
    %423 = vmatpush1.bf16.msra.mxu0 0
    %424 = vmatprep.subr.bf16.mxu0 0
    %425 = vmatpush1.bf16.msra.mxu0 0
    %426 = vmatprep.subr.bf16.mxu0 0
    %427 = vmatpush1.bf16.msra.mxu0 0
    %428 = vmatprep.subr.bf16.mxu0 0
    %429 = vmatpush1.bf16.msra.mxu0 0
    %430 = vmatprep.subr.bf16.mxu0 0
    %431 = vmatpush1.bf16.msra.mxu0 0
    %432 = vmatprep.mubr.bf16.mxu0 0
    %433 = vmatmul.mubr.bf16.gmra.mrb[0].mxu0 %v97
    %v434 = vpop.f32.mrb[0].mxu0
    %v435 = vadd.f32 %v382, %v434
    %v436 = vpop.f32.mrb[0].mxu0
    %v437 = vadd.f32 %v384, %v436
    %v438 = vpop.f32.mrb[0].mxu0
    %v439 = vadd.f32 %v386, %v438
    %v440 = vpop.f32.mrb[0].mxu0
    %v441 = vadd.f32 %v388, %v440
    %442 = vmatprep.mubr.bf16.mxu0 0
    %443 = vmatmul.mubr.bf16.gmra.mrb[0].mxu0 %v100
    %v444 = vpop.f32.mrb[0].mxu0
    %v445 = vadd.f32 %v392, %v444
    %v446 = vpop.f32.mrb[0].mxu0
    %v447 = vadd.f32 %v394, %v446
    %v448 = vpop.f32.mrb[0].mxu0
    %v449 = vadd.f32 %v396, %v448
    %v450 = vpop.f32.mrb[0].mxu0
    %v451 = vadd.f32 %v398, %v450
    %452 = vdwg.mxu0
    %v453 = vmax.f32 %v435, %v445
    %v454 = vmax.f32 %v437, %v447
    %v455 = vmax.f32 %v439, %v449
    %v456 = vmax.f32 %v441, %v451
    %v457 = vmax.f32 %v453, %v454
    %v458 = vmax.f32 %v455, %v456
    %v459 = vmax.f32 %v457, 0.0
    %v460 = vmax.f32 %v458, 0.0
    %vm463 = vcmask 1045504
    %v464 = vrot.slane %v459, 2
    %v465 = vrot.slane %v460, 2
    %v466 = vsel %vm463, %v464, %v465
    %vm468 = vcmask 1043456
    %v469 = vrot.slane %v459, 4
    %v470 = vrot.slane %v460, 4
    %v471 = vsel %vm468, %v469, %v470
    %vm473 = vcmask 1041408
    %v474 = vrot.slane %v459, 6
    %v475 = vrot.slane %v460, 6
    %v476 = vsel %vm473, %v474, %v475
    %v478 = vpack.c.bf16 %v459, %v459
    %v479 = vpack.c.bf16 %v466, %v466
    %v480 = vpack.c.bf16 %v471, %v471
    %v481 = vpack.c.bf16 %v476, %v476
    %v482 = vpack.c.bf16 %v460, %v460
    %v483 = vld [vmem:[%s2] sm:$0xf]
    %v484 = vld [vmem:[%s2 + $0x4] sm:$0xf]
    %v485 = vld [vmem:[%s2 + $0x8] sm:$0xf]
    %v486 = vld [vmem:[%s2 + $0xc] sm:$0xf]
    %v487 = vld [vmem:[%s2 + $0x10] sm:$0xf]
    %v488 = vld [vmem:[%s2 + $0x14] sm:$0xf]
    %v489 = vld [vmem:[%s2 + $0x18] sm:$0xf]
    %v490 = vld [vmem:[%s2 + $0x1c] sm:$0xf]
    %v491 = vld [vmem:[%s2 + $0x20] sm:$0xf]
    %v492 = vld [vmem:[%s2 + $0x24] sm:$0xf]
    %v493 = vld [vmem:[%s2 + $0x28] sm:$0xf]
    %v494 = vld [vmem:[%s2 + $0x2c] sm:$0xf]
    %v495 = vld [vmem:[%s2 + $0x30] sm:$0xf]
    %v496 = vld [vmem:[%s2 + $0x34] sm:$0xf]
    %v497 = vld [vmem:[%s2 + $0x38] sm:$0xf]
    %v498 = vld [vmem:[%s2 + $0x3c] sm:$0xf]
    %v499 = vld [vmem:[%s2 + $0x40] sm:$0xf]
    %v500 = vld [vmem:[%s2 + $0x44] sm:$0xf]
    %v501 = vld [vmem:[%s2 + $0x48] sm:$0xf]
    %v502 = vld [vmem:[%s2 + $0x4c] sm:$0xf]
    %v503 = vld [vmem:[%s2 + $0x50] sm:$0xf]
    %v504 = vld [vmem:[%s2 + $0x54] sm:$0xf]
    %v505 = vld [vmem:[%s2 + $0x58] sm:$0xf]
    %v506 = vld [vmem:[%s2 + $0x5c] sm:$0xf]
    %v507 = vld [vmem:[%s2 + $0x60] sm:$0xf]
    %v508 = vld [vmem:[%s2 + $0x64] sm:$0xf]
    %v509 = vld [vmem:[%s2 + $0x68] sm:$0xf]
    %v510 = vld [vmem:[%s2 + $0x6c] sm:$0xf]
    %v511 = vld [vmem:[%s2 + $0x70] sm:$0xf]
    %v512 = vld [vmem:[%s2 + $0x74] sm:$0xf]
    %v513 = vld [vmem:[%s2 + $0x78] sm:$0xf]
    %v514 = vld [vmem:[%s2 + $0x7c] sm:$0xf]
    %v515 = vld [vmem:[%s2 + $0x80] sm:$0xf]
    %v516 = vld [vmem:[%s2 + $0x84] sm:$0xf]
    %v517 = vld [vmem:[%s2 + $0x88] sm:$0xf]
    %v518 = vld [vmem:[%s2 + $0x8c] sm:$0xf]
    %v519 = vld [vmem:[%s2 + $0x90] sm:$0xf]
    %v520 = vld [vmem:[%s2 + $0x94] sm:$0xf]
    %v521 = vld [vmem:[%s2 + $0x98] sm:$0xf]
    %v522 = vld [vmem:[%s2 + $0x9c] sm:$0xf]
    %v523 = vld [vmem:[%s2 + $0xa0] sm:$0xf]
    %v524 = vld [vmem:[%s2 + $0xa4] sm:$0xf]
    %v525 = vld [vmem:[%s2 + $0xa8] sm:$0xf]
    %v526 = vld [vmem:[%s2 + $0xac] sm:$0xf]
    %v527 = vld [vmem:[%s2 + $0xb0] sm:$0xf]
    %v528 = vld [vmem:[%s2 + $0xb4] sm:$0xf]
    %v529 = vld [vmem:[%s2 + $0xb8] sm:$0xf]
    %v530 = vld [vmem:[%s2 + $0xbc] sm:$0xf]
    %v531 = vld [vmem:[%s2 + $0xc0] sm:$0xf]
    %v532 = vld [vmem:[%s2 + $0xc4] sm:$0xf]
    %v533 = vld [vmem:[%s2 + $0xc8] sm:$0xf]
    %v534 = vld [vmem:[%s2 + $0xcc] sm:$0xf]
    %v535 = vld [vmem:[%s2 + $0xd0] sm:$0xf]
    %v536 = vld [vmem:[%s2 + $0xd4] sm:$0xf]
    %v537 = vld [vmem:[%s2 + $0xd8] sm:$0xf]
    %v538 = vld [vmem:[%s2 + $0xdc] sm:$0xf]
    %v539 = vld [vmem:[%s2 + $0xe0] sm:$0xf]
    %v540 = vld [vmem:[%s2 + $0xe4] sm:$0xf]
    %v541 = vld [vmem:[%s2 + $0xe8] sm:$0xf]
    %v542 = vld [vmem:[%s2 + $0xec] sm:$0xf]
    %v543 = vld [vmem:[%s2 + $0xf0] sm:$0xf]
    %v544 = vld [vmem:[%s2 + $0xf4] sm:$0xf]
    %v545 = vld [vmem:[%s2 + $0xf8] sm:$0xf]
    %v546 = vld [vmem:[%s2 + $0xfc] sm:$0xf]
    %v547 = vld [vmem:[%s2 + $0x100] sm:$0xf]
    %v548 = vld [vmem:[%s2 + $0x104] sm:$0xf]
    %v549 = vld [vmem:[%s2 + $0x108] sm:$0xf]
    %v550 = vld [vmem:[%s2 + $0x10c] sm:$0xf]
    %v551 = vld [vmem:[%s2 + $0x110] sm:$0xf]
    %v552 = vld [vmem:[%s2 + $0x114] sm:$0xf]
    %v553 = vld [vmem:[%s2 + $0x118] sm:$0xf]
    %v554 = vld [vmem:[%s2 + $0x11c] sm:$0xf]
    %v555 = vld [vmem:[%s2 + $0x120] sm:$0xf]
    %v556 = vld [vmem:[%s2 + $0x124] sm:$0xf]
    %v557 = vld [vmem:[%s2 + $0x128] sm:$0xf]
    %v558 = vld [vmem:[%s2 + $0x12c] sm:$0xf]
    %v559 = vld [vmem:[%s2 + $0x130] sm:$0xf]
    %v560 = vld [vmem:[%s2 + $0x134] sm:$0xf]
    %v561 = vld [vmem:[%s2 + $0x138] sm:$0xf]
    %v562 = vld [vmem:[%s2 + $0x13c] sm:$0xf]
    %v643 = vunpack.c.l.b16 %v483
    %v644 = vunpack.c.l.b16 %v484
    %v645 = vunpack.c.l.b16 %v485
    %v646 = vunpack.c.l.b16 %v486
    %v647 = vunpack.c.l.b16 %v487
    %v648 = vunpack.c.l.b16 %v488
    %v649 = vunpack.c.l.b16 %v489
    %v650 = vunpack.c.l.b16 %v490
    %v651 = vunpack.c.l.b16 %v491
    %v652 = vunpack.c.l.b16 %v492
    %v653 = vunpack.c.l.b16 %v493
    %v654 = vunpack.c.l.b16 %v494
    %v655 = vunpack.c.l.b16 %v495
    %v656 = vunpack.c.l.b16 %v496
    %v657 = vunpack.c.l.b16 %v497
    %v658 = vunpack.c.l.b16 %v498
    %v659 = vunpack.c.l.b16 %v499
    %v660 = vunpack.c.l.b16 %v500
    %v661 = vunpack.c.l.b16 %v501
    %v662 = vunpack.c.l.b16 %v502
    %v663 = vunpack.c.l.b16 %v503
    %v664 = vunpack.c.l.b16 %v504
    %v665 = vunpack.c.l.b16 %v505
    %v666 = vunpack.c.l.b16 %v506
    %v667 = vunpack.c.l.b16 %v507
    %v668 = vunpack.c.l.b16 %v508
    %v669 = vunpack.c.l.b16 %v509
    %v670 = vunpack.c.l.b16 %v510
    %v671 = vunpack.c.l.b16 %v511
    %v672 = vunpack.c.l.b16 %v512
    %v673 = vunpack.c.l.b16 %v513
    %v674 = vunpack.c.l.b16 %v514
    %v675 = vunpack.c.l.b16 %v515
    %v676 = vunpack.c.l.b16 %v516
    %v677 = vunpack.c.l.b16 %v517
    %v678 = vunpack.c.l.b16 %v518
    %v679 = vunpack.c.l.b16 %v519
    %v680 = vunpack.c.l.b16 %v520
    %v681 = vunpack.c.l.b16 %v521
    %v682 = vunpack.c.l.b16 %v522
    %v683 = vunpack.c.l.b16 %v523
    %v684 = vunpack.c.l.b16 %v524
    %v685 = vunpack.c.l.b16 %v525
    %v686 = vunpack.c.l.b16 %v526
    %v687 = vunpack.c.l.b16 %v527
    %v688 = vunpack.c.l.b16 %v528
    %v689 = vunpack.c.l.b16 %v529
    %v690 = vunpack.c.l.b16 %v530
    %v691 = vunpack.c.l.b16 %v531
    %v692 = vunpack.c.l.b16 %v532
    %v693 = vunpack.c.l.b16 %v533
    %v694 = vunpack.c.l.b16 %v534
    %v695 = vunpack.c.l.b16 %v535
    %v696 = vunpack.c.l.b16 %v536
    %v697 = vunpack.c.l.b16 %v537
    %v698 = vunpack.c.l.b16 %v538
    %v699 = vunpack.c.l.b16 %v539
    %v700 = vunpack.c.l.b16 %v540
    %v701 = vunpack.c.l.b16 %v541
    %v702 = vunpack.c.l.b16 %v542
    %v703 = vunpack.c.l.b16 %v543
    %v704 = vunpack.c.l.b16 %v544
    %v705 = vunpack.c.l.b16 %v545
    %v706 = vunpack.c.l.b16 %v546
    %v707 = vunpack.c.l.b16 %v547
    %v708 = vunpack.c.l.b16 %v548
    %v709 = vunpack.c.l.b16 %v549
    %v710 = vunpack.c.l.b16 %v550
    %v711 = vunpack.c.l.b16 %v551
    %v712 = vunpack.c.l.b16 %v552
    %v713 = vunpack.c.l.b16 %v553
    %v714 = vunpack.c.l.b16 %v554
    %v715 = vunpack.c.l.b16 %v555
    %v716 = vunpack.c.l.b16 %v556
    %v717 = vunpack.c.l.b16 %v557
    %v718 = vunpack.c.l.b16 %v558
    %v719 = vunpack.c.l.b16 %v559
    %v720 = vunpack.c.l.b16 %v560
    %v721 = vunpack.c.l.b16 %v561
    %v722 = vunpack.c.l.b16 %v562
    %v723 = vpack.c.b16 %v644, %v643
    %v724 = vpack.c.b16 %v646, %v645
    %v725 = vpack.c.b16 %v648, %v647
    %v726 = vpack.c.b16 %v650, %v649
    %v727 = vpack.c.b16 %v652, %v651
    %v728 = vpack.c.b16 %v654, %v653
    %v729 = vpack.c.b16 %v656, %v655
    %v730 = vpack.c.b16 %v658, %v657
    %v731 = vpack.c.b16 %v660, %v659
    %v732 = vpack.c.b16 %v662, %v661
    %v733 = vpack.c.b16 %v664, %v663
    %v734 = vpack.c.b16 %v666, %v665
    %v735 = vpack.c.b16 %v668, %v667
    %v736 = vpack.c.b16 %v670, %v669
    %v737 = vpack.c.b16 %v672, %v671
    %v738 = vpack.c.b16 %v674, %v673
    %v739 = vpack.c.b16 %v676, %v675
    %v740 = vpack.c.b16 %v678, %v677
    %v741 = vpack.c.b16 %v680, %v679
    %v742 = vpack.c.b16 %v682, %v681
    %v743 = vpack.c.b16 %v684, %v683
    %v744 = vpack.c.b16 %v686, %v685
    %v745 = vpack.c.b16 %v688, %v687
    %v746 = vpack.c.b16 %v690, %v689
    %v747 = vpack.c.b16 %v692, %v691
    %v748 = vpack.c.b16 %v694, %v693
    %v749 = vpack.c.b16 %v696, %v695
    %v750 = vpack.c.b16 %v698, %v697
    %v751 = vpack.c.b16 %v700, %v699
    %v752 = vpack.c.b16 %v702, %v701
    %v753 = vpack.c.b16 %v704, %v703
    %v754 = vpack.c.b16 %v706, %v705
    %v755 = vpack.c.b16 %v708, %v707
    %v756 = vpack.c.b16 %v710, %v709
    %v757 = vpack.c.b16 %v712, %v711
    %v758 = vpack.c.b16 %v714, %v713
    %v759 = vpack.c.b16 %v716, %v715
    %v760 = vpack.c.b16 %v718, %v717
    %v761 = vpack.c.b16 %v720, %v719
    %v762 = vpack.c.b16 %v722, %v721
    %803 = vmatprep.subr.bf16.mxu0 0
    %804 = vmatpush1.bf16.msra.mxu0 %v723
    %805 = vmatprep.subr.bf16.mxu0 0
    %806 = vmatpush1.bf16.msra.mxu0 %v724
    %807 = vmatprep.subr.bf16.mxu0 0
    %808 = vmatpush1.bf16.msra.mxu0 %v725
    %809 = vmatprep.subr.bf16.mxu0 0
    %810 = vmatpush1.bf16.msra.mxu0 %v726
    %811 = vmatprep.subr.bf16.mxu0 0
    %812 = vmatpush1.bf16.msra.mxu0 %v727
    %813 = vmatprep.subr.bf16.mxu0 0
    %814 = vmatpush1.bf16.msra.mxu0 %v728
    %815 = vmatprep.subr.bf16.mxu0 0
    %816 = vmatpush1.bf16.msra.mxu0 %v729
    %817 = vmatprep.subr.bf16.mxu0 0
    %818 = vmatpush1.bf16.msra.mxu0 %v730
    %819 = vmatprep.subr.bf16.mxu0 0
    %820 = vmatpush1.bf16.msra.mxu0 %v731
    %821 = vmatprep.subr.bf16.mxu0 0
    %822 = vmatpush1.bf16.msra.mxu0 %v732
    %823 = vmatprep.subr.bf16.mxu0 0
    %824 = vmatpush1.bf16.msra.mxu0 %v733
    %825 = vmatprep.subr.bf16.mxu0 0
    %826 = vmatpush1.bf16.msra.mxu0 %v734
    %827 = vmatprep.subr.bf16.mxu0 0
    %828 = vmatpush1.bf16.msra.mxu0 %v735
    %829 = vmatprep.subr.bf16.mxu0 0
    %830 = vmatpush1.bf16.msra.mxu0 %v736
    %831 = vmatprep.subr.bf16.mxu0 0
    %832 = vmatpush1.bf16.msra.mxu0 %v737
    %833 = vmatprep.subr.bf16.mxu0 0
    %834 = vmatpush1.bf16.msra.mxu0 %v738
    %835 = vmatprep.mubr.bf16.mxu0 %v479
    %836 = vmatmul.mubr.bf16.gmra.mrb[0].mxu0 %v478
    %v837 = vpop.f32.mrb[0].mxu0
    %v838 = vadd.f32 0.0, %v837
    %v839 = vpop.f32.mrb[0].mxu0
    %v840 = vpop.f32.mrb[0].mxu0
    %v841 = vpop.f32.mrb[0].mxu0
    %842 = vdwg.mxu0
    %843 = vmatprep.subr.bf16.mxu0 0
    %844 = vmatpush1.bf16.msra.mxu0 %v739
    %845 = vmatprep.subr.bf16.mxu0 0
    %846 = vmatpush1.bf16.msra.mxu0 %v740
    %847 = vmatprep.subr.bf16.mxu0 0
    %848 = vmatpush1.bf16.msra.mxu0 %v741
    %849 = vmatprep.subr.bf16.mxu0 0
    %850 = vmatpush1.bf16.msra.mxu0 %v742
    %851 = vmatprep.subr.bf16.mxu0 0
    %852 = vmatpush1.bf16.msra.mxu0 %v743
    %853 = vmatprep.subr.bf16.mxu0 0
    %854 = vmatpush1.bf16.msra.mxu0 %v744
    %855 = vmatprep.subr.bf16.mxu0 0
    %856 = vmatpush1.bf16.msra.mxu0 %v745
    %857 = vmatprep.subr.bf16.mxu0 0
    %858 = vmatpush1.bf16.msra.mxu0 %v746
    %859 = vmatprep.subr.bf16.mxu0 0
    %860 = vmatpush1.bf16.msra.mxu0 %v747
    %861 = vmatprep.subr.bf16.mxu0 0
    %862 = vmatpush1.bf16.msra.mxu0 %v748
    %863 = vmatprep.subr.bf16.mxu0 0
    %864 = vmatpush1.bf16.msra.mxu0 %v749
    %865 = vmatprep.subr.bf16.mxu0 0
    %866 = vmatpush1.bf16.msra.mxu0 %v750
    %867 = vmatprep.subr.bf16.mxu0 0
    %868 = vmatpush1.bf16.msra.mxu0 %v751
    %869 = vmatprep.subr.bf16.mxu0 0
    %870 = vmatpush1.bf16.msra.mxu0 %v752
    %871 = vmatprep.subr.bf16.mxu0 0
    %872 = vmatpush1.bf16.msra.mxu0 %v753
    %873 = vmatprep.subr.bf16.mxu0 0
    %874 = vmatpush1.bf16.msra.mxu0 %v754
    %875 = vmatprep.mubr.bf16.mxu0 %v481
    %876 = vmatmul.mubr.bf16.gmra.mrb[0].mxu0 %v480
    %v877 = vpop.f32.mrb[0].mxu0
    %v878 = vadd.f32 %v838, %v877
    %v879 = vpop.f32.mrb[0].mxu0
    %v880 = vpop.f32.mrb[0].mxu0
    %v881 = vpop.f32.mrb[0].mxu0
    %882 = vdwg.mxu0
    %883 = vmatprep.subr.bf16.mxu0 0
    %884 = vmatpush1.bf16.msra.mxu0 %v755
    %885 = vmatprep.subr.bf16.mxu0 0
    %886 = vmatpush1.bf16.msra.mxu0 %v756
    %887 = vmatprep.subr.bf16.mxu0 0
    %888 = vmatpush1.bf16.msra.mxu0 %v757
    %889 = vmatprep.subr.bf16.mxu0 0
    %890 = vmatpush1.bf16.msra.mxu0 %v758
    %891 = vmatprep.subr.bf16.mxu0 0
    %892 = vmatpush1.bf16.msra.mxu0 %v759
    %893 = vmatprep.subr.bf16.mxu0 0
    %894 = vmatpush1.bf16.msra.mxu0 %v760
    %895 = vmatprep.subr.bf16.mxu0 0
    %896 = vmatpush1.bf16.msra.mxu0 %v761
    %897 = vmatprep.subr.bf16.mxu0 0
    %898 = vmatpush1.bf16.msra.mxu0 %v762
    %899 = vmatprep.subr.bf16.mxu0 0
    %900 = vmatpush1.bf16.msra.mxu0 0
    %901 = vmatprep.subr.bf16.mxu0 0
    %902 = vmatpush1.bf16.msra.mxu0 0
    %903 = vmatprep.subr.bf16.mxu0 0
    %904 = vmatpush1.bf16.msra.mxu0 0
    %905 = vmatprep.subr.bf16.mxu0 0
    %906 = vmatpush1.bf16.msra.mxu0 0
    %907 = vmatprep.subr.bf16.mxu0 0
    %908 = vmatpush1.bf16.msra.mxu0 0
    %909 = vmatprep.subr.bf16.mxu0 0
    %910 = vmatpush1.bf16.msra.mxu0 0
    %911 = vmatprep.subr.bf16.mxu0 0
    %912 = vmatpush1.bf16.msra.mxu0 0
    %913 = vmatprep.subr.bf16.mxu0 0
    %914 = vmatpush1.bf16.msra.mxu0 0
    %915 = vmatprep.mubr.bf16.mxu0 0
    %916 = vmatmul.mubr.bf16.gmra.mrb[0].mxu0 %v482
    %v917 = vpop.f32.mrb[0].mxu0
    %v918 = vadd.f32 %v878, %v917
    %v919 = vpop.f32.mrb[0].mxu0
    %v920 = vpop.f32.mrb[0].mxu0
    %v921 = vpop.f32.mrb[0].mxu0
    %922 = vdwg.mxu0
    %v923 = vld [vmem:[%s3] sm:$0xff]
    %v925 = vrot.slane %v918, 2
    %v927 = vmax.f32 %v918, %v925
    %929 = vrot.lane.b32.xlu0 %v927, 64
    %v930 = vpop.permute.xlu0 %929
    %v932 = vmax.f32 %v927, %v930
    %v933 = vlaneseq
    %v934 = vshrl.u32 %v933, 7
    %v935 = vsub.s32 0, %v934
    %v936 = vrot.slane %v923, %v935
    %v937 = vadd.f32 %v932, %v936
    %v938 = vmax.f32 %v937, 0.0
    %v939 = vlaneseq
    %v940 = vshrl.u32 %v939, 7
    %v941 = vsub.s32 1, %v940
    %v942 = vrot.slane %v923, %v941
    %v943 = vmul.f32 %v938, %v942
    %vm944 = vcmask 517120
    %v945 = vsel %vm944, %v943, 0.0
    %946 = vadd.xlane.f32.xlu0 %v945
    %v947 = vpop.xlane.xlu0 %946
    %v948 = vlaneseq
    %v949 = vshrl.u32 %v948, 7
    %v950 = vsub.s32 2, %v949
    %v951 = vrot.slane %v923, %v950
    %v952 = vmul.f32 %v938, %v951
    %vm953 = vcmask 521220
    %v954 = vsel %vm953, %v952, 0.0
    %955 = vadd.xlane.f32.xlu0 %v954
    %v956 = vpop.xlane.xlu0 %955
    %v958 = vrot.slane %v956, 4
    %v960 = vadd.f32 %v947, %v958
    %v961 = vlaneseq
    %v962 = vshrl.u32 %v961, 7
    %v963 = vsub.s32 3, %v962
    %v964 = vrot.slane %v923, %v963
    %v965 = vmul.f32 %v938, %v964
    %v966 = vsel %vm944, %v965, 0.0
    %967 = vadd.xlane.f32.xlu0 %v966
    %v968 = vpop.xlane.xlu0 %967
    %v969 = vlaneseq
    %v970 = vshrl.u32 %v969, 7
    %v971 = vsub.s32 4, %v970
    %v972 = vrot.slane %v923, %v971
    %v973 = vmul.f32 %v938, %v972
    %v974 = vsel %vm953, %v973, 0.0
    %975 = vadd.xlane.f32.xlu0 %v974
    %v976 = vpop.xlane.xlu0 %975
    %v978 = vrot.slane %v976, 4
    %v980 = vadd.f32 %v968, %v978
    %982 = vrot.lane.b32.xlu0 %v980, 1
    %v983 = vpop.permute.xlu0 %982
    %vm985 = vcmask 7168
    %v986 = vsel %vm985, %v960, %v983
    %v987 = vlaneseq
    %v988 = vshrl.u32 %v987, 7
    %v989 = vsub.s32 5, %v988
    %v990 = vrot.slane %v923, %v989
    %v991 = vadd.f32 %v986, %v990
    %vm992 = vcmask 9216
    %993 = vst.msk [vmem:[#allocation2] sm:$0x3] %vm992, %v991
    // Predicated region
    $region18: #{my_cnn_forward.1} parent=1 // pred_check
      _
    $region19: #{my_cnn_forward.1} parent=1 // pred_check_branch
      %995 = sbr.rel (0) target = $region21
    $region20: #{my_cnn_forward.1} parent=1 // pred_region
      %s997 = ssub.s32 32, 32
      %998 = vsyncadd [#allocation3], %s997
      %s1000 = sshll.u32 [#allocation2], 4
      %s1001 = int_to_ptr.vmem [resolvable:$true] %s1000
      %1003 = dma.vmem_to_hbm [thread:$0]  %s1001, 32, %s4, [#allocation3]
    $region21: #{my_cnn_forward.1} parent=1 // pred_fallthru
      _
    // Predicated region
    $region22: #{my_cnn_forward.1} parent=1 // pred_check
      _
    $region23: #{my_cnn_forward.1} parent=1 // pred_check_branch
      %1005 = sbr.rel (0) target = $region25
    $region24: #{my_cnn_forward.1} parent=1 // pred_region
      %1006 = dma.done [#allocation3], 32
    $region25: #{my_cnn_forward.1} parent=1 // pred_fallthru
      _
    %1007 = vsyncpa [#allocation3], 1

</llo_original>
